<compile_context>
chip_gen: v6e
topology: v6e:2x2x1
jax: 0.10.0
libtpu: 0.0.40
codegen_flags: <defaults>
</compile_context>

<pallas_src>
import functools

import numpy as np
import jax
import jax.numpy as jnp
from jax.experimental import pallas as pl
from jax.experimental.pallas import tpu as pltpu


# ----------------------------------------------------------------------------
# Anchor utilities (pure numpy constants, identical to bbox_tools)
# ----------------------------------------------------------------------------
def generate_anchor_base(base_size=16, ratios=(0.5, 1.0, 2.0), anchor_scales=(8, 16, 32)):
    py = base_size / 2.0
    px = base_size / 2.0
    anchor_base = np.zeros((len(ratios) * len(anchor_scales), 4), dtype=np.float32)
    for i in range(len(ratios)):
        for j in range(len(anchor_scales)):
            h = base_size * anchor_scales[j] * np.sqrt(ratios[i])
            w = base_size * anchor_scales[j] * np.sqrt(1.0 / ratios[i])
            index = i * len(anchor_scales) + j
            anchor_base[index, 0] = py - h / 2.0
            anchor_base[index, 1] = px - w / 2.0
            anchor_base[index, 2] = py + h / 2.0
            anchor_base[index, 3] = px + w / 2.0
    return anchor_base


def enumerate_shifted_anchor(anchor_base, feat_stride, height, width):
    shift_y = np.arange(0, height * feat_stride, feat_stride)
    shift_x = np.arange(0, width * feat_stride, feat_stride)
    shift_x, shift_y = np.meshgrid(shift_x, shift_y)
    shift = np.stack((shift_y.ravel(), shift_x.ravel(),
                      shift_y.ravel(), shift_x.ravel()), axis=1)
    A = anchor_base.shape[0]
    K = shift.shape[0]
    anchor = anchor_base.reshape((1, A, 4)) + shift.reshape((1, K, 4)).transpose((1, 0, 2))
    return anchor.reshape((K * A, 4)).astype(np.float32)


# ----------------------------------------------------------------------------
# ProposalCreator (host-side numpy; dynamic shapes -> no Pallas equivalent)
# ----------------------------------------------------------------------------
def loc2bbox(src_bbox, loc):
    if src_bbox.shape[0] == 0:
        return np.zeros((0, 4), dtype=loc.dtype)
    src_h = src_bbox[:, 2] - src_bbox[:, 0]
    src_w = src_bbox[:, 3] - src_bbox[:, 1]
    src_cy = src_bbox[:, 0] + 0.5 * src_h
    src_cx = src_bbox[:, 1] + 0.5 * src_w
    dy, dx, dh, dw = loc[:, 0], loc[:, 1], loc[:, 2], loc[:, 3]
    cy = dy * src_h + src_cy
    cx = dx * src_w + src_cx
    h = np.exp(dh) * src_h
    w = np.exp(dw) * src_w
    dst = np.zeros_like(loc)
    dst[:, 0] = cy - 0.5 * h
    dst[:, 1] = cx - 0.5 * w
    dst[:, 2] = cy + 0.5 * h
    dst[:, 3] = cx + 0.5 * w
    return dst


def nms_numpy(boxes, scores, thresh):
    y1, x1, y2, x2 = boxes[:, 0], boxes[:, 1], boxes[:, 2], boxes[:, 3]
    areas = (y2 - y1) * (x2 - x1)
    order = scores.argsort()[::-1]
    keep = []
    while order.size > 0:
        i = order[0]
        keep.append(i)
        yy1 = np.maximum(y1[i], y1[order[1:]])
        xx1 = np.maximum(x1[i], x1[order[1:]])
        yy2 = np.minimum(y2[i], y2[order[1:]])
        xx2 = np.minimum(x2[i], x2[order[1:]])
        inter = np.maximum(0.0, yy2 - yy1) * np.maximum(0.0, xx2 - xx1)
        iou = inter / (areas[i] + areas[order[1:]] - inter + 1e-12)
        order = order[np.where(iou <= thresh)[0] + 1]
    return np.asarray(keep, dtype=np.int64)


def proposal_layer(loc, score, anchor, img_size, scale=1.0,
                   nms_thresh=0.7, n_pre_nms=6000, n_post_nms=300, min_size=16):
    # eval-mode ProposalCreator semantics (n_test_pre_nms / n_test_post_nms)
    roi = loc2bbox(anchor, loc)
    roi[:, 0::2] = np.clip(roi[:, 0::2], 0, img_size[0])
    roi[:, 1::2] = np.clip(roi[:, 1::2], 0, img_size[1])
    ms = min_size * scale
    hs = roi[:, 2] - roi[:, 0]
    ws = roi[:, 3] - roi[:, 1]
    keep = np.where((hs >= ms) & (ws >= ms))[0]
    roi, score = roi[keep, :], score[keep]
    order = score.ravel().argsort()[::-1]
    if n_pre_nms > 0:
        order = order[:n_pre_nms]
    roi, score = roi[order, :], score[order]
    keep = nms_numpy(roi, score, nms_thresh)
    if n_post_nms > 0:
        keep = keep[:n_post_nms]
    return roi[keep]


# ----------------------------------------------------------------------------
# Fused RPN head kernel.
# Per grid step (one batch element x one H-tile):
#   3 MXU matmuls (K = 3*C_in, dy-decomposed W-im2col input) + bias + ReLU,
#   then one fused lane-padded loc/score head matmul.
# All in-kernel slices are along the leading (8-aligned) row axis only.
# ----------------------------------------------------------------------------
def _rpn_head_kernel(xt_ref, wc_ref, bc_ref, wh_ref, bh_ref, out_ref, *, rows, wp):
    x = xt_ref[0, 0]                                   # ((TH+2)*Wp, 3*C_in) bf16
    # tap dy=0 initialises the accumulator together with the broadcast conv bias
    acc = jnp.dot(x[0:rows], wc_ref[0],
                  preferred_element_type=jnp.float32) + bc_ref[...]
    acc = acc + jnp.dot(x[wp:wp + rows], wc_ref[1],
                        preferred_element_type=jnp.float32)
    acc = acc + jnp.dot(x[2 * wp:2 * wp + rows], wc_ref[2],
                        preferred_element_type=jnp.float32)
    h = jnp.maximum(acc, 0.0).astype(wh_ref.dtype)     # (rows, C_mid) bf16
    out_ref[0, 0] = (jnp.dot(h, wh_ref[...], preferred_element_type=jnp.float32)
                     + bh_ref[...])                    # (rows, D_pad) f32


@functools.partial(jax.jit, static_argnames=("tile_h",))
def rpn_head_pallas(x_nhwc, packed, tile_h=None):
    """x_nhwc: (N, H, W, C_in) float32. Returns (N, H*W, D_pad) float32."""
    N, H, W, C_in = x_nhwc.shape
    wc, bc = packed["w_conv"], packed["b_conv"]        # (3, 3*C_in, C_mid), (1, C_mid)
    wh, bh = packed["w_head"], packed["b_head"]        # (C_mid, D_pad),     (1, D_pad)
    C3, C_mid = wc.shape[1], wc.shape[2]
    D_pad = wh.shape[1]
    assert C3 == 3 * C_in

    Wp = ((W + 7) // 8) * 8                            # sublane-aligned row stride
    if tile_h is None:
        tile_h = max(1, min(H, 256 // Wp))             # ~256 output rows / tile
    tile_h = min(tile_h, H)
    n_th = pl.cdiv(H, tile_h)
    Hp = n_th * tile_h
    rows = tile_h * Wp

    # bf16 BEFORE padding, then spatial halo pad and W-only im2col.
    xb = x_nhwc.astype(jnp.bfloat16)
    xp = jnp.pad(xb, ((0, 0), (1, 1), (1, 1), (0, 0)))                          # (N,H+2,W+2,C)
    xw = jnp.concatenate([xp[:, :, dx:dx + W, :] for dx in range(3)], axis=-1)  # (N,H+2,W,3C)
    xw = jnp.pad(xw, ((0, 0), (0, Hp - H), (0, Wp - W), (0, 0)))                # (N,Hp+2,Wp,3C)
    # overlapping (TH+2)-row slabs, one per spatial tile (1-row halo each side)
    xt = jnp.stack([xw[:, i * tile_h:i * tile_h + tile_h + 2] for i in range(n_th)],
                   axis=1)                                                       # (N,nT,TH+2,Wp,3C)
    xt = xt.reshape(N, n_th, (tile_h + 2) * Wp, C3)

    kernel = functools.partial(_rpn_head_kernel, rows=rows, wp=Wp)
    grid_spec = pltpu.PrefetchScalarGridSpec(
        num_scalar_prefetch=0,
        grid=(N, n_th),
        in_specs=[
            pl.BlockSpec((1, 1, (tile_h + 2) * Wp, C3), lambda n, i: (n, i, 0, 0)),
            pl.BlockSpec((3, C3, C_mid), lambda n, i: (0, 0, 0)),   # resident weights
            pl.BlockSpec((1, C_mid), lambda n, i: (0, 0)),
            pl.BlockSpec((C_mid, D_pad), lambda n, i: (0, 0)),
            pl.BlockSpec((1, D_pad), lambda n, i: (0, 0)),
        ],
        out_specs=pl.BlockSpec((1, 1, rows, D_pad), lambda n, i: (n, i, 0, 0)),
    )
    out = pl.pallas_call(
        kernel,
        out_shape=jax.ShapeDtypeStruct((N, n_th, rows, D_pad), jnp.float32),
        grid_spec=grid_spec,
        compiler_params=pltpu.CompilerParams(
            dimension_semantics=("parallel", "parallel")),   # batch AND H-tiles shard across TCs
    )(xt, wc, bc, wh, bh)

    out = out.reshape(N, Hp, Wp, D_pad)[:, :H, :W, :]        # crop W/H padding
    return out.reshape(N, H * W, D_pad)


# ----------------------------------------------------------------------------
# Parameter init / packing
# ----------------------------------------------------------------------------
def init_rpn_params(key, C_in, C_mid, n_anchor):
    ks = jax.random.split(key, 6)
    w_conv = jax.random.normal(ks[0], (3, 3, C_in, C_mid), jnp.float32) * 0.01
    b_conv = jax.random.normal(ks[1], (C_mid,), jnp.float32) * 0.01
    w_loc = jax.random.normal(ks[2], (C_mid, n_anchor * 4), jnp.float32) * 0.01
    b_loc = jax.random.normal(ks[3], (n_anchor * 4,), jnp.float32) * 0.01
    w_score = jax.random.normal(ks[4], (C_mid, n_anchor * 2), jnp.float32) * 0.01
    b_score = jax.random.normal(ks[5], (n_anchor * 2,), jnp.float32) * 0.01
    return dict(w_conv=w_conv, b_conv=b_conv, w_loc=w_loc, b_loc=b_loc,
                w_score=w_score, b_score=b_score)


def pack_rpn_params(params, n_anchor, compute_dtype=jnp.bfloat16):
    w_conv = params["w_conv"]                       # (3, 3, C_in, C_mid) [dy, dx, cin, cmid]
    C_in, C_mid = w_conv.shape[2], w_conv.shape[3]
    # dy-decomposed weight: rows ordered (dx, c_in) to match the W-im2col layout
    wc = w_conv.reshape(3, 3 * C_in, C_mid).astype(compute_dtype)
    bc = params["b_conv"].reshape(1, C_mid).astype(jnp.float32)

    A = n_anchor
    w_loc, b_loc = params["w_loc"], params["b_loc"]            # (C_mid, 4A), (4A,)
    w_score, b_score = params["w_score"], params["b_score"]    # (C_mid, 2A), (2A,)
    # PyTorch view(b,hh,ww,A,2): score channel 2a -> bg, 2a+1 -> fg
    w_bg, w_fg = w_score[:, 0::2], w_score[:, 1::2]
    b_bg, b_fg = b_score[0::2], b_score[1::2]

    D = 6 * A
    D_pad = ((D + 127) // 128) * 128                # lane-dense padded head width (=128)
    wh = jnp.concatenate(
        [w_loc, w_bg, w_fg, jnp.zeros((C_mid, D_pad - D), jnp.float32)],
        axis=1).astype(compute_dtype)
    bh = jnp.concatenate(
        [b_loc, b_bg, b_fg, jnp.zeros((D_pad - D,), jnp.float32)])[None, :].astype(jnp.float32)
    return dict(w_conv=wc, b_conv=bc, w_head=wh, b_head=bh)


# ----------------------------------------------------------------------------
# Full RegionProposalNetwork forward
# ----------------------------------------------------------------------------
def region_proposal_network_forward(x_nchw, params, feat_stride=16, img_size=None,
                                    scale=1.0, nms_thresh=0.7, n_pre_nms=6000,
                                    n_post_nms=300, min_size=16, tile_h=None):
    N, C_in, H, W = x_nchw.shape
    anchor_base = generate_anchor_base()
    A = anchor_base.shape[0]
    anchor = enumerate_shifted_anchor(anchor_base, feat_stride, H, W)
    if img_size is None:
        img_size = (H * feat_stride, W * feat_stride)

    packed = pack_rpn_params(params, A)
    x_nhwc = jnp.transpose(jnp.asarray(x_nchw, jnp.float32), (0, 2, 3, 1))
    head_out = rpn_head_pallas(x_nhwc, packed, tile_h=tile_h)  # (N, HW, D_pad) f32

    HW = H * W
    loc = head_out[:, :, :4 * A]
    bg = head_out[:, :, 4 * A:5 * A]
    fg = head_out[:, :, 5 * A:6 * A]
    rpn_locs = loc.reshape(N, HW * A, 4)                       # == permute+view(b,-1,4)
    scores_4d = jnp.stack([bg, fg], axis=-1)                   # (N, HW, A, 2)
    rpn_scores = scores_4d.reshape(N, HW * A, 2)               # == view(b,-1,2)
    rpn_fg_scores = jax.nn.softmax(scores_4d, axis=-1)[..., 1].reshape(N, HW * A)

    # TODO(synk): proposal selection (argsort + NMS) has dynamic output shapes; like
    # the original module's .cpu().data.numpy() path it runs on host numpy, not Pallas.
    # (Optional latency win: jax.lax.top_k on device before transfer at real anchor counts.)
    locs_np = np.asarray(rpn_locs, np.float32)
    fg_np = np.asarray(rpn_fg_scores, np.float32)
    rois_list, idx_list = [], []
    for i in range(N):
        roi = proposal_layer(locs_np[i], fg_np[i], anchor, img_size, scale,
                             nms_thresh=nms_thresh, n_pre_nms=n_pre_nms,
                             n_post_nms=n_post_nms, min_size=min_size)
        rois_list.append(roi)
        idx_list.append(np.full((roi.shape[0],), i, dtype=np.int32))
    rois = np.concatenate(rois_list, axis=0)
    roi_indices = np.concatenate(idx_list, axis=0)
    return rpn_locs, rpn_scores, rois, roi_indices, anchor


# ----------------------------------------------------------------------------
# Numpy reference for the kernel path (same bf16-rounded operands, f32 math)
# ----------------------------------------------------------------------------
def reference_head_out(x_nhwc, packed):
    x = np.asarray(jnp.asarray(x_nhwc, jnp.bfloat16).astype(jnp.float32))
    wc = np.asarray(jnp.asarray(packed["w_conv"], jnp.float32))   # (3, 3*C_in, C_mid)
    bc = np.asarray(packed["b_conv"], np.float32)
    wh = np.asarray(jnp.asarray(packed["w_head"], jnp.float32))
    bh = np.asarray(packed["b_head"], np.float32)
    N, H, W, C_in = x.shape
    C_mid = wc.shape[2]
    xp = np.pad(x, ((0, 0), (1, 1), (1, 1), (0, 0)))
    xw = np.concatenate([xp[:, :, dx:dx + W, :] for dx in range(3)], axis=-1)  # (N,H+2,W,3C)
    acc = np.zeros((N, H * W, C_mid), np.float32)
    for dy in range(3):
        sh = xw[:, dy:dy + H].reshape(N, H * W, 3 * C_in)
        acc = acc + sh @ wc[dy]
    h = np.maximum(acc + bc, 0.0)
    h = np.asarray(jnp.asarray(h, jnp.bfloat16).astype(jnp.float32))  # mirror kernel bf16 cast
    return h @ wh + bh


if __name__ == "__main__":
    key = jax.random.PRNGKey(0)
    N, C_in, H, W = 2, 16, 16, 16      # feature map (NCHW like PyTorch input)
    C_mid = 32                         # scaled-down stand-in for 512
    feat_stride = 16
    scale = 1.0
    img_size = (H * feat_stride, W * feat_stride)

    anchor_base = generate_anchor_base()
    n_anchor = anchor_base.shape[0]    # 9

    k_x, k_p = jax.random.split(key)
    x = jax.random.normal(k_x, (N, C_in, H, W), jnp.float32)
    params = init_rpn_params(k_p, C_in, C_mid, n_anchor)

    # --- kernel correctness check (multi-tile spatial grid) against numpy ------
    packed = pack_rpn_params(params, n_anchor)
    x_nhwc = jnp.transpose(x, (0, 2, 3, 1))
    head_out = jax.block_until_ready(rpn_head_pallas(x_nhwc, packed, tile_h=8))
    ref = reference_head_out(x_nhwc, packed)
    np.testing.assert_allclose(np.asarray(head_out), ref, rtol=2e-2, atol=2e-4)

    # --- full RPN forward (default tile heuristic) ------------------------------
    rpn_locs, rpn_scores, rois, roi_indices, anchor = region_proposal_network_forward(
        x, params, feat_stride=feat_stride, img_size=img_size, scale=scale)
    rpn_locs, rpn_scores = jax.block_until_ready((rpn_locs, rpn_scores))

    A, HW = n_anchor, H * W
    ref_locs = ref[:, :, :4 * A].reshape(N, HW * A, 4)
    ref_scores = np.stack([ref[:, :, 4 * A:5 * A], ref[:, :, 5 * A:6 * A]],
                          axis=-1).reshape(N, HW * A, 2)
    np.testing.assert_allclose(np.asarray(rpn_locs), ref_locs, rtol=2e-2, atol=2e-4)
    np.testing.assert_allclose(np.asarray(rpn_scores), ref_scores, rtol=2e-2, atol=2e-4)

    assert anchor.shape == (HW * A, 4)
    assert rois.ndim == 2 and rois.shape[1] == 4
    assert roi_indices.shape[0] == rois.shape[0]
    if rois.shape[0] > 0:
        assert roi_indices.min() >= 0 and roi_indices.max() < N

    print("KERNEL_OK")
</pallas_src>

<mosaic_0001>
module attributes {stable_mosaic.version = 11 : i64} {
  func.func @_rpn_head_kernel(%arg0: i32, %arg1: i32, %arg2: memref<1x1x160x48xbf16, #tpu.memory_space<vmem>>, %arg3: memref<3x48x32xbf16, #tpu.memory_space<vmem>>, %arg4: memref<1x32xf32, #tpu.memory_space<vmem>>, %arg5: memref<32x128xbf16, #tpu.memory_space<vmem>>, %arg6: memref<1x128xf32, #tpu.memory_space<vmem>>, %arg7: memref<1x1x128x128xf32, #tpu.memory_space<vmem>>) attributes {dimension_semantics = [#tpu.dimension_semantics<parallel>, #tpu.dimension_semantics<parallel>], iteration_bounds = array<i64: 2, 2>, scalar_prefetch = 0 : i64, scratch_operands = 0 : i64, tpu.core_type = #tpu.core_type<tc>, window_params = [{transform_indices = @transform_0, window_bounds = array<i64: 1, 1, 160, 48>}, {pipeline_mode = #tpu.pipeline_mode<synchronous>, transform_indices = @transform_1, window_bounds = array<i64: 3, 48, 32>}, {pipeline_mode = #tpu.pipeline_mode<synchronous>, transform_indices = @transform_2, window_bounds = array<i64: 1, 32>}, {pipeline_mode = #tpu.pipeline_mode<synchronous>, transform_indices = @transform_3, window_bounds = array<i64: 32, 128>}, {pipeline_mode = #tpu.pipeline_mode<synchronous>, transform_indices = @transform_4, window_bounds = array<i64: 1, 128>}, {transform_indices = @transform_5, window_bounds = array<i64: 1, 1, 128, 128>}]} {
    %c0 = arith.constant 0 : index
    %c0_0 = arith.constant 0 : index
    %c0_1 = arith.constant 0 : index
    %c0_2 = arith.constant 0 : index
    %0 = vector.load %arg2[%c0, %c0_0, %c0_1, %c0_2] : memref<1x1x160x48xbf16, #tpu.memory_space<vmem>>, vector<1x1x160x48xbf16>
    %1 = vector.shape_cast %0 : vector<1x1x160x48xbf16> to vector<160x48xbf16>
    %2 = vector.extract_strided_slice %1 {offsets = [0, 0], sizes = [128, 48], strides = [1, 1]} : vector<160x48xbf16> to vector<128x48xbf16>
    %c0_3 = arith.constant 0 : index
    %c0_4 = arith.constant 0 : index
    %c0_5 = arith.constant 0 : index
    %3 = vector.load %arg3[%c0_3, %c0_4, %c0_5] : memref<3x48x32xbf16, #tpu.memory_space<vmem>>, vector<1x48x32xbf16>
    %4 = vector.shape_cast %3 : vector<1x48x32xbf16> to vector<48x32xbf16>
    %cst = arith.constant dense<0.000000e+00> : vector<128x32xf32>
    %5 = tpu.matmul %2, %4, %cst {dimension_numbers = #tpu.dot_dimension_numbers<[1], [0], [0], [1], [0, 0, 1, 1], [], []>} : vector<128x48xbf16>, vector<48x32xbf16>, vector<128x32xf32> -> vector<128x32xf32>
    %c0_6 = arith.constant 0 : index
    %c0_7 = arith.constant 0 : index
    %6 = vector.load %arg4[%c0_6, %c0_7] : memref<1x32xf32, #tpu.memory_space<vmem>>, vector<1x32xf32>
    %7 = vector.broadcast %6 : vector<1x32xf32> to vector<128x32xf32>
    %8 = arith.addf %5, %7 : vector<128x32xf32>
    %9 = vector.extract_strided_slice %1 {offsets = [16, 0], sizes = [128, 48], strides = [1, 1]} : vector<160x48xbf16> to vector<128x48xbf16>
    %c1 = arith.constant 1 : index
    %c0_8 = arith.constant 0 : index
    %c0_9 = arith.constant 0 : index
    %10 = vector.load %arg3[%c1, %c0_8, %c0_9] : memref<3x48x32xbf16, #tpu.memory_space<vmem>>, vector<1x48x32xbf16>
    %11 = vector.shape_cast %10 : vector<1x48x32xbf16> to vector<48x32xbf16>
    %cst_10 = arith.constant dense<0.000000e+00> : vector<128x32xf32>
    %12 = tpu.matmul %9, %11, %cst_10 {dimension_numbers = #tpu.dot_dimension_numbers<[1], [0], [0], [1], [0, 0, 1, 1], [], []>} : vector<128x48xbf16>, vector<48x32xbf16>, vector<128x32xf32> -> vector<128x32xf32>
    %13 = arith.addf %8, %12 : vector<128x32xf32>
    %14 = vector.extract_strided_slice %1 {offsets = [32, 0], sizes = [128, 48], strides = [1, 1]} : vector<160x48xbf16> to vector<128x48xbf16>
    %c2 = arith.constant 2 : index
    %c0_11 = arith.constant 0 : index
    %c0_12 = arith.constant 0 : index
    %15 = vector.load %arg3[%c2, %c0_11, %c0_12] : memref<3x48x32xbf16, #tpu.memory_space<vmem>>, vector<1x48x32xbf16>
    %16 = vector.shape_cast %15 : vector<1x48x32xbf16> to vector<48x32xbf16>
    %cst_13 = arith.constant dense<0.000000e+00> : vector<128x32xf32>
    %17 = tpu.matmul %14, %16, %cst_13 {dimension_numbers = #tpu.dot_dimension_numbers<[1], [0], [0], [1], [0, 0, 1, 1], [], []>} : vector<128x48xbf16>, vector<48x32xbf16>, vector<128x32xf32> -> vector<128x32xf32>
    %18 = arith.addf %13, %17 : vector<128x32xf32>
    %cst_14 = arith.constant 0.000000e+00 : f32
    %19 = vector.broadcast %cst_14 : f32 to vector<128x32xf32>
    %20 = arith.maximumf %18, %19 : vector<128x32xf32>
    %21 = arith.truncf %20 : vector<128x32xf32> to vector<128x32xbf16>
    %c0_15 = arith.constant 0 : index
    %c0_16 = arith.constant 0 : index
    %22 = vector.load %arg5[%c0_15, %c0_16] : memref<32x128xbf16, #tpu.memory_space<vmem>>, vector<32x128xbf16>
    %cst_17 = arith.constant dense<0.000000e+00> : vector<128x128xf32>
    %23 = tpu.matmul %21, %22, %cst_17 {dimension_numbers = #tpu.dot_dimension_numbers<[1], [0], [0], [1], [0, 0, 1, 1], [], []>} : vector<128x32xbf16>, vector<32x128xbf16>, vector<128x128xf32> -> vector<128x128xf32>
    %c0_18 = arith.constant 0 : index
    %c0_19 = arith.constant 0 : index
    %24 = vector.load %arg6[%c0_18, %c0_19] : memref<1x128xf32, #tpu.memory_space<vmem>>, vector<1x128xf32>
    %25 = vector.broadcast %24 : vector<1x128xf32> to vector<128x128xf32>
    %26 = arith.addf %23, %25 : vector<128x128xf32>
    %c0_20 = arith.constant 0 : index
    %c0_21 = arith.constant 0 : index
    %c0_22 = arith.constant 0 : index
    %c0_23 = arith.constant 0 : index
    %27 = vector.load %arg7[%c0_20, %c0_21, %c0_22, %c0_23] : memref<1x1x128x128xf32, #tpu.memory_space<vmem>>, vector<1x1x128x128xf32>
    %28 = vector.shape_cast %27 : vector<1x1x128x128xf32> to vector<128x128xf32>
    %29 = vector.shape_cast %26 : vector<128x128xf32> to vector<1x1x128x128xf32>
    tpu.vector_store %arg7[%c0_20, %c0_21, %c0_22, %c0_23], %29 {strides = array<i32>} : memref<1x1x128x128xf32, #tpu.memory_space<vmem>>, vector<1x1x128x128xf32>,
    return
  }
  func.func @transform_0(%arg0: i32, %arg1: i32) -> (i32, i32, i32, i32) {
    %c0_i32 = arith.constant 0 : i32
    %c0_i32_0 = arith.constant 0 : i32
    %c0_i32_1 = arith.constant 0 : i32
    return %arg0, %arg1, %c0_i32, %c0_i32_0 : i32, i32, i32, i32
  }
  func.func @transform_1(%arg0: i32, %arg1: i32) -> (i32, i32, i32) {
    %c0_i32 = arith.constant 0 : i32
    %c0_i32_0 = arith.constant 0 : i32
    %c0_i32_1 = arith.constant 0 : i32
    %c0_i32_2 = arith.constant 0 : i32
    return %c0_i32, %c0_i32_0, %c0_i32_1 : i32, i32, i32
  }
  func.func @transform_2(%arg0: i32, %arg1: i32) -> (i32, i32) {
    %c0_i32 = arith.constant 0 : i32
    %c0_i32_0 = arith.constant 0 : i32
    %c0_i32_1 = arith.constant 0 : i32
    return %c0_i32, %c0_i32_0 : i32, i32
  }
  func.func @transform_3(%arg0: i32, %arg1: i32) -> (i32, i32) {
    %c0_i32 = arith.constant 0 : i32
    %c0_i32_0 = arith.constant 0 : i32
    %c0_i32_1 = arith.constant 0 : i32
    return %c0_i32, %c0_i32_0 : i32, i32
  }
  func.func @transform_4(%arg0: i32, %arg1: i32) -> (i32, i32) {
    %c0_i32 = arith.constant 0 : i32
    %c0_i32_0 = arith.constant 0 : i32
    %c0_i32_1 = arith.constant 0 : i32
    return %c0_i32, %c0_i32_0 : i32, i32
  }
  func.func @transform_5(%arg0: i32, %arg1: i32) -> (i32, i32, i32, i32) {
    %c0_i32 = arith.constant 0 : i32
    %c0_i32_0 = arith.constant 0 : i32
    %c0_i32_1 = arith.constant 0 : i32
    return %arg0, %arg1, %c0_i32, %c0_i32_0 : i32, i32, i32, i32
  }
}

</mosaic_0001>

<llo_original>
// kernel: rpn_head_pallas.1
$region0: #{rpn_head_pallas.1}
  #allocation0 [shape = 'u32[]', space=smem, size = 0x4, offset = 0x4, fixed_abs, tag = 'smem constant byte address 0x4 - core index']
  #allocation1 [shape = 'u32[144,128]{1,0:T(1,128)}', space=vmem, size = 0x12000, scoped, tag = 'internal scratch']
  %s0 = inlined_call_operand.vmem [shape: bf16[2,2,160,48], index: 0, kind: input, shape index: {}]
  %s1 = inlined_call_operand.vmem [shape: bf16[3,48,32], index: 1, kind: input, shape index: {}]
  %s2 = inlined_call_operand.vmem [shape: f32[1,32], index: 2, kind: input, shape index: {}]
  %s3 = inlined_call_operand.vmem [shape: bf16[32,128], index: 3, kind: input, shape index: {}]
  %s4 = inlined_call_operand.vmem [shape: f32[1,128], index: 4, kind: input, shape index: {}]
  %s5 = inlined_call_operand.hbm [shape: f32[2,2,128,128], index: 5, kind: output, shape index: {}]
  %s6 = sld [smem:[#allocation0]]
  $region53: #{rpn_head_pallas.1} parent=0
    _
  %s8 = ssub.s32 1, %s6
  %s9 = scalar_select 0, %s8, %s6
  $region1: #{rpn_head_pallas.1} parent=0
    #allocation2 [shape = 'u8[131072]{0}', space=vmem, size = 0x20000, scoped, tag = 'output window, operand 0']
    #allocation3 [shape = 's32[2]{0}', space=sflag, size = 0x8, scoped, tag = 'scoped memory for rpn_head_pallas.1']
    %10 = vsyncpa [#allocation3], 0
    %s11 = scalar_lea.sflag [#allocation3], 1
    %12 = vsyncpa %s11, 0
    loop: start=0, step=1, limit=6
    $region2: #{rpn_head_pallas.1} parent=1 // loop_pre_header
      _
    $region3: #{rpn_head_pallas.1} parent=1 // loop_header
      %s14 = sphi 0, %s18
      %p15 = scmp.ge.s32.totalorder %s14, 6
      %s21 = sphi 0, %s33
      %s22 = sphi 0, %s29
      %s23 = sphi 0, %s21
      %s24 = sphi 0, %s22
      %s25 = sphi 0, %s23
      %s26 = sphi 0, %s24
      %s38 = sphi 0, %s40
      %s41 = sphi 0, %s38
      %s42 = sphi 0, %s41
      %s58 = sphi 0, %s42
      %s62 = sphi 0, %s62
      %s64 = sphi 0, %s62
      %s65 = sphi 0, %s64
      %s79 = sphi 0, %s65
      %s83 = sphi 0, %s83
      %s85 = sphi 0, %s83
      %s86 = sphi 0, %s85
      %s100 = sphi 0, %s86
      %s104 = sphi 0, %s104
      %s106 = sphi 0, %s104
      %s107 = sphi 0, %s106
      %s121 = sphi 0, %s107
      %s125 = sphi 0, %s125
      %s127 = sphi 0, %s125
      %s128 = sphi 0, %s127
      %s142 = sphi 0, %s128
      %s150 = sphi 0, %s152
      %s153 = sphi 0, %s150
      %s154 = sphi 0, %s153
      %s170 = sphi 0, %s154
    $region4: #{rpn_head_pallas.1} parent=1 // loop_header_branch
      %17 = sbr.rel (%p15) target = $region8
    $region5: #{rpn_head_pallas.1} parent=1 // loop_body
      %s19 = ssub.s32 %s14, 1
      %s20 = ssub.s32 %s14, 2
      %s27 = sadd.s32 1, %s22
      %p28 = scmp.ge.s32.totalorder %s27, 2
      %s29 = scalar_select %p28, 0, %s27
      %s30 = sadd.s32 1, %s21
      %s31 = scalar_select %p28, %s30, %s21
      %p32 = scmp.ge.s32.totalorder %s31, 2
      %s33 = scalar_select %p32, 0, %s31
      %s34 = ssub.s32 %s21, %s33
      %s35 = ssub.s32 %s22, %s29
      %s36 = sor.u32 %s34, %s35
      %p37 = scmp.eq.s32.totalorder %s36, 0
      %s39 = sadd.s32 %s38, 1
      %s40 = scalar_select %p37, %s38, %s39
      %p43 = pneg %p37
      %p44 = scmp.eq.s32.totalorder %s14, 3
      %p45 = por %p43, %p44
      %p46 = scmp.ne.s32.totalorder %s38, %s41
      %p47 = scmp.eq.s32.totalorder %s14, 0
      %p48 = por %p46, %p47
      %p49 = scmp.ne.s32.totalorder %s38, %s41
      %p50 = scmp.eq.s32.totalorder %s19, 3
      %p51 = por %p49, %p50
      %p52 = scmp.ne.s32.totalorder %s41, %s42
      %p53 = scmp.eq.s32.totalorder %s19, 0
      %p54 = por %p52, %p53
      %p55 = scmp.ne.s32.totalorder %s41, %s42
      %p56 = scmp.eq.s32.totalorder %s20, 3
      %p57 = por %p55, %p56
      %p59 = scmp.ne.s32.totalorder %s42, %s58
      %p60 = scmp.eq.s32.totalorder %s20, 0
      %p61 = por %p59, %p60
      %s63 = sadd.s32 %s62, 1
      %p66 = scmp.eq.s32.totalorder %s14, 3
      %p67 = scmp.ne.s32.totalorder %s62, %s64
      %p68 = scmp.eq.s32.totalorder %s14, 0
      %p69 = por %p67, %p68
      %p70 = scmp.ne.s32.totalorder %s62, %s64
      %p71 = scmp.eq.s32.totalorder %s19, 3
      %p72 = por %p70, %p71
      %p73 = scmp.ne.s32.totalorder %s64, %s65
      %p74 = scmp.eq.s32.totalorder %s19, 0
      %p75 = por %p73, %p74
      %p76 = scmp.ne.s32.totalorder %s64, %s65
      %p77 = scmp.eq.s32.totalorder %s20, 3
      %p78 = por %p76, %p77
      %p80 = scmp.ne.s32.totalorder %s65, %s79
      %p81 = scmp.eq.s32.totalorder %s20, 0
      %p82 = por %p80, %p81
      %s84 = sadd.s32 %s83, 1
      %p87 = scmp.eq.s32.totalorder %s14, 3
      %p88 = scmp.ne.s32.totalorder %s83, %s85
      %p89 = scmp.eq.s32.totalorder %s14, 0
      %p90 = por %p88, %p89
      %p91 = scmp.ne.s32.totalorder %s83, %s85
      %p92 = scmp.eq.s32.totalorder %s19, 3
      %p93 = por %p91, %p92
      %p94 = scmp.ne.s32.totalorder %s85, %s86
      %p95 = scmp.eq.s32.totalorder %s19, 0
      %p96 = por %p94, %p95
      %p97 = scmp.ne.s32.totalorder %s85, %s86
      %p98 = scmp.eq.s32.totalorder %s20, 3
      %p99 = por %p97, %p98
      %p101 = scmp.ne.s32.totalorder %s86, %s100
      %p102 = scmp.eq.s32.totalorder %s20, 0
      %p103 = por %p101, %p102
      %s105 = sadd.s32 %s104, 1
      %p108 = scmp.eq.s32.totalorder %s14, 3
      %p109 = scmp.ne.s32.totalorder %s104, %s106
      %p110 = scmp.eq.s32.totalorder %s14, 0
      %p111 = por %p109, %p110
      %p112 = scmp.ne.s32.totalorder %s104, %s106
      %p113 = scmp.eq.s32.totalorder %s19, 3
      %p114 = por %p112, %p113
      %p115 = scmp.ne.s32.totalorder %s106, %s107
      %p116 = scmp.eq.s32.totalorder %s19, 0
      %p117 = por %p115, %p116
      %p118 = scmp.ne.s32.totalorder %s106, %s107
      %p119 = scmp.eq.s32.totalorder %s20, 3
      %p120 = por %p118, %p119
      %p122 = scmp.ne.s32.totalorder %s107, %s121
      %p123 = scmp.eq.s32.totalorder %s20, 0
      %p124 = por %p122, %p123
      %s126 = sadd.s32 %s125, 1
      %p129 = scmp.eq.s32.totalorder %s14, 3
      %p130 = scmp.ne.s32.totalorder %s125, %s127
      %p131 = scmp.eq.s32.totalorder %s14, 0
      %p132 = por %p130, %p131
      %p133 = scmp.ne.s32.totalorder %s125, %s127
      %p134 = scmp.eq.s32.totalorder %s19, 3
      %p135 = por %p133, %p134
      %p136 = scmp.ne.s32.totalorder %s127, %s128
      %p137 = scmp.eq.s32.totalorder %s19, 0
      %p138 = por %p136, %p137
      %p139 = scmp.ne.s32.totalorder %s127, %s128
      %p140 = scmp.eq.s32.totalorder %s20, 3
      %p141 = por %p139, %p140
      %p143 = scmp.ne.s32.totalorder %s128, %s142
      %p144 = scmp.eq.s32.totalorder %s20, 0
      %p145 = por %p143, %p144
      %s146 = ssub.s32 %s21, %s33
      %s147 = ssub.s32 %s22, %s29
      %s148 = sor.u32 %s146, %s147
      %p149 = scmp.eq.s32.totalorder %s148, 0
      %s151 = sadd.s32 %s150, 1
      %s152 = scalar_select %p149, %s150, %s151
      %p155 = pneg %p149
      %p156 = scmp.eq.s32.totalorder %s14, 3
      %p157 = por %p155, %p156
      %p158 = scmp.ne.s32.totalorder %s150, %s153
      %p159 = scmp.eq.s32.totalorder %s14, 0
      %p160 = por %p158, %p159
      %p161 = scmp.ne.s32.totalorder %s150, %s153
      %p162 = scmp.eq.s32.totalorder %s19, 3
      %p163 = por %p161, %p162
      %p164 = scmp.ne.s32.totalorder %s153, %s154
      %p165 = scmp.eq.s32.totalorder %s19, 0
      %p166 = por %p164, %p165
      %p167 = scmp.ne.s32.totalorder %s153, %s154
      %p168 = scmp.eq.s32.totalorder %s20, 3
      %p169 = por %p167, %p168
      %p171 = scmp.ne.s32.totalorder %s154, %s170
      %p172 = scmp.eq.s32.totalorder %s20, 0
      %p173 = por %p171, %p172
      %p174 = scmp.le.s32.totalorder 1, %s14
      %p175 = scmp.lt.s32.totalorder %s14, 5
      %p176 = pnand %p174, %p175
      %p177 = pneg %p176
      // Predicated region
      $region9: #{rpn_head_pallas.1} parent=5 // pred_check
        _
      $region10: #{rpn_head_pallas.1} parent=5 // pred_check_branch
        %179 = sbr.rel (%p176) target = $region12
      $region11: #{rpn_head_pallas.1} parent=5 // pred_region
        %s180 = ssub.s32 %s14, 1
        // Predicated region
        $region13: #{rpn_head_pallas.1} parent=11 // pred_check
          %p181 = pneg %p75
        $region14: #{rpn_head_pallas.1} parent=11 // pred_check_branch
          %183 = sbr.rel (%p181) target = $region16
        $region15: #{rpn_head_pallas.1} parent=11 // pred_region
          _
        $region16: #{rpn_head_pallas.1} parent=11 // pred_fallthru
          _
        // Predicated region
        $region17: #{rpn_head_pallas.1} parent=11 // pred_check
          %p184 = pneg %p96
        $region18: #{rpn_head_pallas.1} parent=11 // pred_check_branch
          %186 = sbr.rel (%p184) target = $region20
        $region19: #{rpn_head_pallas.1} parent=11 // pred_region
          _
        $region20: #{rpn_head_pallas.1} parent=11 // pred_fallthru
          _
        // Predicated region
        $region21: #{rpn_head_pallas.1} parent=11 // pred_check
          %p187 = pneg %p117
        $region22: #{rpn_head_pallas.1} parent=11 // pred_check_branch
          %189 = sbr.rel (%p187) target = $region24
        $region23: #{rpn_head_pallas.1} parent=11 // pred_region
          _
        $region24: #{rpn_head_pallas.1} parent=11 // pred_fallthru
          _
        // Predicated region
        $region25: #{rpn_head_pallas.1} parent=11 // pred_check
          %p190 = pneg %p138
        $region26: #{rpn_head_pallas.1} parent=11 // pred_check_branch
          %192 = sbr.rel (%p190) target = $region28
        $region27: #{rpn_head_pallas.1} parent=11 // pred_region
          _
        $region28: #{rpn_head_pallas.1} parent=11 // pred_fallthru
          _
      $region12: #{rpn_head_pallas.1} parent=5 // pred_fallthru
        _
      %p193 = scmp.lt.s32.totalorder %s14, 4
      // Predicated region
      $region29: #{rpn_head_pallas.1} parent=5 // pred_check
        %p194 = pneg %p193
      $region30: #{rpn_head_pallas.1} parent=5 // pred_check_branch
        %196 = sbr.rel (%p194) target = $region32
      $region31: #{rpn_head_pallas.1} parent=5 // pred_region
        // Predicated region
        $region33: #{rpn_head_pallas.1} parent=31 // pred_check
          %p197 = pneg %p48
        $region34: #{rpn_head_pallas.1} parent=31 // pred_check_branch
          %199 = sbr.rel (%p197) target = $region36
        $region35: #{rpn_head_pallas.1} parent=31 // pred_region
          %p200 = scmp.lt.s32.totalorder %s21, 1
          %s201 = scalar_select %p200, %s21, 1
          %p202 = scmp.lt.s32.totalorder %s22, 1
          %s203 = scalar_select %p202, %s22, 1
          %s204 = smul.addr %s203, 20
          %s205 = smul.addr %s201, 40
          %s206 = sadd.s32 %s204, %s205
          %s207 = smul.addr %s206, 4
          %s208 = scalar_lea.vmem %s0, %s207
        $region36: #{rpn_head_pallas.1} parent=31 // pred_fallthru
          _
      $region32: #{rpn_head_pallas.1} parent=5 // pred_fallthru
        _
      %p209 = scmp.le.s32.totalorder 1, %s14
      %p210 = scmp.lt.s32.totalorder %s14, 5
      %p211 = pnand %p209, %p210
      %p212 = pneg %p211
      // Predicated region
      $region37: #{rpn_head_pallas.1} parent=5 // pred_check
        _
      $region38: #{rpn_head_pallas.1} parent=5 // pred_check_branch
        %214 = sbr.rel (%p211) target = $region40
      $region39: #{rpn_head_pallas.1} parent=5 // pred_region
        %s215 = ssub.s32 %s14, 1
        %p216 = scmp.lt.s32.totalorder %s23, 1
        %s217 = scalar_select %p216, %s23, 1
        %p218 = scmp.lt.s32.totalorder %s24, 1
        %s219 = scalar_select %p218, %s24, 1
        %s220 = smul.addr %s219, 20
        %s221 = smul.addr %s217, 40
        %s222 = sadd.s32 %s220, %s221
        %s223 = smul.addr %s222, 4
        %s224 = scalar_lea.vmem %s0, %s223
        %p225 = pneg %p54
        %p226 = pneg %p51
        %p227 = pneg %p75
        %p228 = pneg %p72
        %p229 = pneg %p96
        %p230 = pneg %p93
        %p231 = pneg %p117
        %p232 = pneg %p114
        %p233 = pneg %p138
        %p234 = pneg %p135
        %p235 = pneg %p166
        %p236 = pneg %p163
        %s237 = sand.u32 %s153, 1
        %s238 = scalar_lea.sflag [#allocation3], %s237
        %s239 = sand.u32 %s153, 1
        %s240 = smul.addr %s239, 128
        %s241 = scalar_lea.vmem [#allocation2], %s240
        %p242 = scmp.lt.s32.totalorder %s23, 1
        %s243 = scalar_select %p242, %s23, 1
        %p244 = scmp.lt.s32.totalorder %s24, 1
        %s245 = scalar_select %p244, %s24, 1
        %s246 = smul.addr %s245, 20
        %s247 = smul.addr %s243, 40
        %s248 = sadd.s32 %s246, %s247
        %s249 = smul.addr %s248, 4
        %s250 = scalar_lea.vmem %s0, %s249
        %v252 = vld [vmem:[%s250] sm:$0xf]
        %v253 = vld [vmem:[%s250 + $0x4] sm:$0xf]
        %v254 = vld [vmem:[%s250 + $0x8] sm:$0xf]
        %v255 = vld [vmem:[%s250 + $0xc] sm:$0xf]
        %v256 = vld [vmem:[%s250 + $0x10] sm:$0xf]
        %v257 = vld [vmem:[%s250 + $0x14] sm:$0xf]
        %v258 = vld [vmem:[%s250 + $0x18] sm:$0xf]
        %v259 = vld [vmem:[%s250 + $0x1c] sm:$0xf]
        %v260 = vld [vmem:[%s250 + $0x20] sm:$0xf]
        %v261 = vld [vmem:[%s250 + $0x24] sm:$0xf]
        %v262 = vld [vmem:[%s250 + $0x28] sm:$0xf]
        %v263 = vld [vmem:[%s250 + $0x2c] sm:$0xf]
        %v264 = vld [vmem:[%s250 + $0x30] sm:$0xf]
        %v265 = vld [vmem:[%s250 + $0x34] sm:$0xf]
        %v266 = vld [vmem:[%s250 + $0x38] sm:$0xf]
        %v267 = vld [vmem:[%s250 + $0x3c] sm:$0xf]
        %v268 = vld [vmem:[%s250 + $0x40] sm:$0xf]
        %v269 = vld [vmem:[%s250 + $0x44] sm:$0xf]
        %v270 = vld [vmem:[%s250 + $0x48] sm:$0xf]
        %v271 = vld [vmem:[%s250 + $0x4c] sm:$0xf]
        %v272 = vld [vmem:[%s1] sm:$0xf]
        %v273 = vld [vmem:[%s1 + $0x4] sm:$0xf]
        %v274 = vld [vmem:[%s1 + $0x8] sm:$0xf]
        %v275 = vld [vmem:[%s1 + $0xc] sm:$0xf]
        %v276 = vld [vmem:[%s1 + $0x10] sm:$0xf]
        %v277 = vld [vmem:[%s1 + $0x14] sm:$0xf]
        %v278 = vld [vmem:[%s2] sm:$0x1]
        %v280 = vlaneseq
        %v281 = vshrl.u32 %v280, 7
        %v282 = vsub.s32 0, %v281
        %v283 = vrot.slane %v278, %v282
        %v301 = vunpack.c.l.b16 %v252
        %v302 = vunpack.c.l.b16 %v253
        %v303 = vunpack.c.l.b16 %v254
        %v304 = vunpack.c.l.b16 %v255
        %v305 = vunpack.c.l.b16 %v256
        %v306 = vunpack.c.l.b16 %v257
        %v307 = vunpack.c.l.b16 %v258
        %v308 = vunpack.c.l.b16 %v259
        %v309 = vunpack.c.l.b16 %v260
        %v310 = vunpack.c.l.b16 %v261
        %v311 = vunpack.c.l.b16 %v262
        %v312 = vunpack.c.l.b16 %v263
        %v313 = vunpack.c.l.b16 %v264
        %v314 = vunpack.c.l.b16 %v265
        %v315 = vunpack.c.l.b16 %v266
        %v316 = vunpack.c.l.b16 %v267
        %v317 = vpack.c.b16 %v302, %v301
        %v318 = vpack.c.b16 %v304, %v303
        %v319 = vpack.c.b16 %v306, %v305
        %v320 = vpack.c.b16 %v308, %v307
        %v321 = vpack.c.b16 %v310, %v309
        %v322 = vpack.c.b16 %v312, %v311
        %v323 = vpack.c.b16 %v314, %v313
        %v324 = vpack.c.b16 %v316, %v315
        %v331 = vunpack.c.l.b16 %v272
        %v332 = vunpack.c.l.b16 %v273
        %v333 = vunpack.c.l.b16 %v274
        %v334 = vunpack.c.l.b16 %v275
        %v335 = vunpack.c.l.b16 %v276
        %v336 = vunpack.c.l.b16 %v277
        %v337 = vpack.c.b16 %v332, %v331
        %v338 = vpack.c.b16 %v334, %v333
        %v339 = vpack.c.b16 %v336, %v335
        %vm343 = vcmask 392192
        %v345 = vsel %vm343, %v317, 0
        %v348 = vsel %vm343, %v318, 0
        %v351 = vsel %vm343, %v319, 0
        %v354 = vsel %vm343, %v320, 0
        %v357 = vsel %vm343, %v321, 0
        %v360 = vsel %vm343, %v322, 0
        %v363 = vsel %vm343, %v323, 0
        %v366 = vsel %vm343, %v324, 0
        %368 = vmatprep.subr.bf16.mxu0 0
        %369 = vmatpush1.bf16.msra.mxu0 0
        %370 = vmatprep.subr.bf16.mxu0 0
        %371 = vmatpush1.bf16.msra.mxu0 0
        %372 = vmatprep.subr.bf16.mxu0 0
        %373 = vmatpush1.bf16.msra.mxu0 0
        %374 = vmatprep.subr.bf16.mxu0 0
        %375 = vmatpush1.bf16.msra.mxu0 0
        %376 = vmatprep.subr.bf16.mxu0 0
        %377 = vmatpush1.bf16.msra.mxu0 0
        %378 = vmatprep.subr.bf16.mxu0 0
        %379 = vmatpush1.bf16.msra.mxu0 %v339
        %380 = vmatprep.subr.bf16.mxu0 0
        %381 = vmatpush1.bf16.msra.mxu0 %v338
        %382 = vmatprep.subr.bf16.mxu0 0
        %383 = vmatpush1.bf16.msra.mxu0 %v337
        %384 = vmatprep.subr.bf16.mxu0 0
        %385 = vmatpush2.bf16.msra.mxu0 0
        %386 = vmatprep.subr.bf16.mxu0 0
        %387 = vmatpush2.bf16.msra.mxu0 0
        %388 = vmatprep.subr.bf16.mxu0 0
        %389 = vmatpush2.bf16.msra.mxu0 0
        %390 = vmatprep.subr.bf16.mxu0 0
        %391 = vmatpush2.bf16.msra.mxu0 0
        %392 = vmatprep.subr.bf16.mxu0 0
        %393 = vmatpush2.bf16.msra.mxu0 0
        %394 = vmatprep.subr.bf16.mxu0 0
        %395 = vmatpush2.bf16.msra.mxu0 0
        %396 = vmatprep.subr.bf16.mxu0 0
        %397 = vmatpush2.bf16.msra.mxu0 0
        %398 = vmatprep.subr.bf16.mxu0 0
        %399 = vmatpush2.bf16.msra.mxu0 0
        %400 = vmatprep.mubr.bf16.mxu0 0
        %401 = vmatmul.mubr.bf16.gmra.mxu0 %v345
        %v402 = vpop.f32.mrf.mxu0
        %v403 = vadd.f32 %v283, %v402
        %v404 = vpop.f32.mrf.mxu0
        %v405 = vpop.f32.mrf.mxu0
        %v406 = vadd.f32 %v283, %v405
        %v407 = vpop.f32.mrf.mxu0
        %408 = vmatprep.mubr.bf16.mxu0 0
        %409 = vmatmul.mubr.bf16.gmra.mxu0 %v348
        %v410 = vpop.f32.mrf.mxu0
        %v411 = vadd.f32 %v283, %v410
        %v412 = vpop.f32.mrf.mxu0
        %v413 = vpop.f32.mrf.mxu0
        %v414 = vadd.f32 %v283, %v413
        %v415 = vpop.f32.mrf.mxu0
        %416 = vmatprep.mubr.bf16.mxu0 0
        %417 = vmatmul.mubr.bf16.gmra.mxu0 %v351
        %v418 = vpop.f32.mrf.mxu0
        %v419 = vadd.f32 %v283, %v418
        %v420 = vpop.f32.mrf.mxu0
        %v421 = vpop.f32.mrf.mxu0
        %v422 = vadd.f32 %v283, %v421
        %v423 = vpop.f32.mrf.mxu0
        %424 = vmatprep.mubr.bf16.mxu0 0
        %425 = vmatmul.mubr.bf16.gmra.mxu0 %v354
        %v426 = vpop.f32.mrf.mxu0
        %v427 = vadd.f32 %v283, %v426
        %v428 = vpop.f32.mrf.mxu0
        %v429 = vpop.f32.mrf.mxu0
        %v430 = vadd.f32 %v283, %v429
        %v431 = vpop.f32.mrf.mxu0
        %432 = vmatprep.mubr.bf16.mxu0 0
        %433 = vmatmul.mubr.bf16.gmra.mxu0 %v357
        %v434 = vpop.f32.mrf.mxu0
        %v435 = vadd.f32 %v283, %v434
        %v436 = vpop.f32.mrf.mxu0
        %v437 = vpop.f32.mrf.mxu0
        %v438 = vadd.f32 %v283, %v437
        %v439 = vpop.f32.mrf.mxu0
        %440 = vmatprep.mubr.bf16.mxu0 0
        %441 = vmatmul.mubr.bf16.gmra.mxu0 %v360
        %v442 = vpop.f32.mrf.mxu0
        %v443 = vadd.f32 %v283, %v442
        %v444 = vpop.f32.mrf.mxu0
        %v445 = vpop.f32.mrf.mxu0
        %v446 = vadd.f32 %v283, %v445
        %v447 = vpop.f32.mrf.mxu0
        %448 = vmatprep.mubr.bf16.mxu0 0
        %449 = vmatmul.mubr.bf16.gmra.mxu0 %v363
        %v450 = vpop.f32.mrf.mxu0
        %v451 = vadd.f32 %v283, %v450
        %v452 = vpop.f32.mrf.mxu0
        %v453 = vpop.f32.mrf.mxu0
        %v454 = vadd.f32 %v283, %v453
        %v455 = vpop.f32.mrf.mxu0
        %456 = vmatprep.mubr.bf16.mxu0 0
        %457 = vmatmul.mubr.bf16.gmra.mxu0 %v366
        %v458 = vpop.f32.mrf.mxu0
        %v459 = vadd.f32 %v283, %v458
        %v460 = vpop.f32.mrf.mxu0
        %v461 = vpop.f32.mrf.mxu0
        %v462 = vadd.f32 %v283, %v461
        %v463 = vpop.f32.mrf.mxu0
        %464 = vdwg.mxu0
        %s465 = scalar_lea.vmem %s1, 24
        %v466 = vld [vmem:[%s465] sm:$0xf]
        %v467 = vld [vmem:[%s465 + $0x4] sm:$0xf]
        %v468 = vld [vmem:[%s465 + $0x8] sm:$0xf]
        %v469 = vld [vmem:[%s465 + $0xc] sm:$0xf]
        %v470 = vld [vmem:[%s465 + $0x10] sm:$0xf]
        %v471 = vld [vmem:[%s465 + $0x14] sm:$0xf]
        %v474 = vunpack.c.l.b16 %v268
        %v475 = vunpack.c.l.b16 %v269
        %v476 = vpack.c.b16 %v475, %v474
        %v483 = vunpack.c.l.b16 %v466
        %v484 = vunpack.c.l.b16 %v467
        %v485 = vunpack.c.l.b16 %v468
        %v486 = vunpack.c.l.b16 %v469
        %v487 = vunpack.c.l.b16 %v470
        %v488 = vunpack.c.l.b16 %v471
        %v489 = vpack.c.b16 %v484, %v483
        %v490 = vpack.c.b16 %v486, %v485
        %v491 = vpack.c.b16 %v488, %v487
        %v496 = vsel %vm343, %v476, 0
        %498 = vmatprep.subr.bf16.mxu0 0
        %499 = vmatpush1.bf16.msra.mxu0 0
        %500 = vmatprep.subr.bf16.mxu0 0
        %501 = vmatpush1.bf16.msra.mxu0 0
        %502 = vmatprep.subr.bf16.mxu0 0
        %503 = vmatpush1.bf16.msra.mxu0 0
        %504 = vmatprep.subr.bf16.mxu0 0
        %505 = vmatpush1.bf16.msra.mxu0 0
        %506 = vmatprep.subr.bf16.mxu0 0
        %507 = vmatpush1.bf16.msra.mxu0 0
        %508 = vmatprep.subr.bf16.mxu0 0
        %509 = vmatpush1.bf16.msra.mxu0 %v491
        %510 = vmatprep.subr.bf16.mxu0 0
        %511 = vmatpush1.bf16.msra.mxu0 %v490
        %512 = vmatprep.subr.bf16.mxu0 0
        %513 = vmatpush1.bf16.msra.mxu0 %v489
        %514 = vmatprep.subr.bf16.mxu0 0
        %515 = vmatpush2.bf16.msra.mxu0 0
        %516 = vmatprep.subr.bf16.mxu0 0
        %517 = vmatpush2.bf16.msra.mxu0 0
        %518 = vmatprep.subr.bf16.mxu0 0
        %519 = vmatpush2.bf16.msra.mxu0 0
        %520 = vmatprep.subr.bf16.mxu0 0
        %521 = vmatpush2.bf16.msra.mxu0 0
        %522 = vmatprep.subr.bf16.mxu0 0
        %523 = vmatpush2.bf16.msra.mxu0 0
        %524 = vmatprep.subr.bf16.mxu0 0
        %525 = vmatpush2.bf16.msra.mxu0 0
        %526 = vmatprep.subr.bf16.mxu0 0
        %527 = vmatpush2.bf16.msra.mxu0 0
        %528 = vmatprep.subr.bf16.mxu0 0
        %529 = vmatpush2.bf16.msra.mxu0 0
        %530 = vmatprep.mubr.bf16.mxu0 0
        %531 = vmatmul.mubr.bf16.gmra.mxu0 %v348
        %v532 = vpop.f32.mrf.mxu0
        %v533 = vadd.f32 0.0, %v532
        %v534 = vpop.f32.mrf.mxu0
        %v535 = vpop.f32.mrf.mxu0
        %v536 = vadd.f32 0.0, %v535
        %v537 = vpop.f32.mrf.mxu0
        %538 = vmatprep.mubr.bf16.mxu0 0
        %539 = vmatmul.mubr.bf16.gmra.mxu0 %v351
        %v540 = vpop.f32.mrf.mxu0
        %v541 = vadd.f32 0.0, %v540
        %v542 = vpop.f32.mrf.mxu0
        %v543 = vpop.f32.mrf.mxu0
        %v544 = vadd.f32 0.0, %v543
        %v545 = vpop.f32.mrf.mxu0
        %546 = vmatprep.mubr.bf16.mxu0 0
        %547 = vmatmul.mubr.bf16.gmra.mxu0 %v354
        %v548 = vpop.f32.mrf.mxu0
        %v549 = vadd.f32 0.0, %v548
        %v550 = vpop.f32.mrf.mxu0
        %v551 = vpop.f32.mrf.mxu0
        %v552 = vadd.f32 0.0, %v551
        %v553 = vpop.f32.mrf.mxu0
        %554 = vmatprep.mubr.bf16.mxu0 0
        %555 = vmatmul.mubr.bf16.gmra.mxu0 %v357
        %v556 = vpop.f32.mrf.mxu0
        %v557 = vadd.f32 0.0, %v556
        %v558 = vpop.f32.mrf.mxu0
        %v559 = vpop.f32.mrf.mxu0
        %v560 = vadd.f32 0.0, %v559
        %v561 = vpop.f32.mrf.mxu0
        %562 = vmatprep.mubr.bf16.mxu0 0
        %563 = vmatmul.mubr.bf16.gmra.mxu0 %v360
        %v564 = vpop.f32.mrf.mxu0
        %v565 = vadd.f32 0.0, %v564
        %v566 = vpop.f32.mrf.mxu0
        %v567 = vpop.f32.mrf.mxu0
        %v568 = vadd.f32 0.0, %v567
        %v569 = vpop.f32.mrf.mxu0
        %570 = vmatprep.mubr.bf16.mxu0 0
        %571 = vmatmul.mubr.bf16.gmra.mxu0 %v363
        %v572 = vpop.f32.mrf.mxu0
        %v573 = vadd.f32 0.0, %v572
        %v574 = vpop.f32.mrf.mxu0
        %v575 = vpop.f32.mrf.mxu0
        %v576 = vadd.f32 0.0, %v575
        %v577 = vpop.f32.mrf.mxu0
        %578 = vmatprep.mubr.bf16.mxu0 0
        %579 = vmatmul.mubr.bf16.gmra.mxu0 %v366
        %v580 = vpop.f32.mrf.mxu0
        %v581 = vadd.f32 0.0, %v580
        %v582 = vpop.f32.mrf.mxu0
        %v583 = vpop.f32.mrf.mxu0
        %v584 = vadd.f32 0.0, %v583
        %v585 = vpop.f32.mrf.mxu0
        %586 = vmatprep.mubr.bf16.mxu0 0
        %587 = vmatmul.mubr.bf16.gmra.mxu0 %v496
        %v588 = vpop.f32.mrf.mxu0
        %v589 = vadd.f32 0.0, %v588
        %v590 = vpop.f32.mrf.mxu0
        %v591 = vpop.f32.mrf.mxu0
        %v592 = vadd.f32 0.0, %v591
        %v593 = vpop.f32.mrf.mxu0
        %594 = vdwg.mxu0
        %v595 = vadd.f32 %v403, %v533
        %v596 = vadd.f32 %v406, %v536
        %v597 = vadd.f32 %v411, %v541
        %v598 = vadd.f32 %v414, %v544
        %v599 = vadd.f32 %v419, %v549
        %v600 = vadd.f32 %v422, %v552
        %v601 = vadd.f32 %v427, %v557
        %v602 = vadd.f32 %v430, %v560
        %v603 = vadd.f32 %v435, %v565
        %v604 = vadd.f32 %v438, %v568
        %v605 = vadd.f32 %v443, %v573
        %v606 = vadd.f32 %v446, %v576
        %v607 = vadd.f32 %v451, %v581
        %v608 = vadd.f32 %v454, %v584
        %v609 = vadd.f32 %v459, %v589
        %v610 = vadd.f32 %v462, %v592
        %s611 = scalar_lea.vmem %s1, 48
        %v612 = vld [vmem:[%s611] sm:$0xf]
        %v613 = vld [vmem:[%s611 + $0x4] sm:$0xf]
        %v614 = vld [vmem:[%s611 + $0x8] sm:$0xf]
        %v615 = vld [vmem:[%s611 + $0xc] sm:$0xf]
        %v616 = vld [vmem:[%s611 + $0x10] sm:$0xf]
        %v617 = vld [vmem:[%s611 + $0x14] sm:$0xf]
        %v620 = vunpack.c.l.b16 %v270
        %v621 = vunpack.c.l.b16 %v271
        %v622 = vpack.c.b16 %v621, %v620
        %v629 = vunpack.c.l.b16 %v612
        %v630 = vunpack.c.l.b16 %v613
        %v631 = vunpack.c.l.b16 %v614
        %v632 = vunpack.c.l.b16 %v615
        %v633 = vunpack.c.l.b16 %v616
        %v634 = vunpack.c.l.b16 %v617
        %v635 = vpack.c.b16 %v630, %v629
        %v636 = vpack.c.b16 %v632, %v631
        %v637 = vpack.c.b16 %v634, %v633
        %v642 = vsel %vm343, %v622, 0
        %644 = vmatprep.subr.bf16.mxu0 0
        %645 = vmatpush1.bf16.msra.mxu0 0
        %646 = vmatprep.subr.bf16.mxu0 0
        %647 = vmatpush1.bf16.msra.mxu0 0
        %648 = vmatprep.subr.bf16.mxu0 0
        %649 = vmatpush1.bf16.msra.mxu0 0
        %650 = vmatprep.subr.bf16.mxu0 0
        %651 = vmatpush1.bf16.msra.mxu0 0
        %652 = vmatprep.subr.bf16.mxu0 0
        %653 = vmatpush1.bf16.msra.mxu0 0
        %654 = vmatprep.subr.bf16.mxu0 0
        %655 = vmatpush1.bf16.msra.mxu0 %v637
        %656 = vmatprep.subr.bf16.mxu0 0
        %657 = vmatpush1.bf16.msra.mxu0 %v636
        %658 = vmatprep.subr.bf16.mxu0 0
        %659 = vmatpush1.bf16.msra.mxu0 %v635
        %660 = vmatprep.subr.bf16.mxu0 0
        %661 = vmatpush2.bf16.msra.mxu0 0
        %662 = vmatprep.subr.bf16.mxu0 0
        %663 = vmatpush2.bf16.msra.mxu0 0
        %664 = vmatprep.subr.bf16.mxu0 0
        %665 = vmatpush2.bf16.msra.mxu0 0
        %666 = vmatprep.subr.bf16.mxu0 0
        %667 = vmatpush2.bf16.msra.mxu0 0
        %668 = vmatprep.subr.bf16.mxu0 0
        %669 = vmatpush2.bf16.msra.mxu0 0
        %670 = vmatprep.subr.bf16.mxu0 0
        %671 = vmatpush2.bf16.msra.mxu0 0
        %672 = vmatprep.subr.bf16.mxu0 0
        %673 = vmatpush2.bf16.msra.mxu0 0
        %674 = vmatprep.subr.bf16.mxu0 0
        %675 = vmatpush2.bf16.msra.mxu0 0
        %676 = vmatprep.mubr.bf16.mxu0 0
        %677 = vmatmul.mubr.bf16.gmra.mxu0 %v351
        %v678 = vpop.f32.mrf.mxu0
        %v679 = vadd.f32 0.0, %v678
        %v680 = vpop.f32.mrf.mxu0
        %v681 = vpop.f32.mrf.mxu0
        %v682 = vadd.f32 0.0, %v681
        %v683 = vpop.f32.mrf.mxu0
        %684 = vmatprep.mubr.bf16.mxu0 0
        %685 = vmatmul.mubr.bf16.gmra.mxu0 %v354
        %v686 = vpop.f32.mrf.mxu0
        %v687 = vadd.f32 0.0, %v686
        %v688 = vpop.f32.mrf.mxu0
        %v689 = vpop.f32.mrf.mxu0
        %v690 = vadd.f32 0.0, %v689
        %v691 = vpop.f32.mrf.mxu0
        %692 = vmatprep.mubr.bf16.mxu0 0
        %693 = vmatmul.mubr.bf16.gmra.mxu0 %v357
        %v694 = vpop.f32.mrf.mxu0
        %v695 = vadd.f32 0.0, %v694
        %v696 = vpop.f32.mrf.mxu0
        %v697 = vpop.f32.mrf.mxu0
        %v698 = vadd.f32 0.0, %v697
        %v699 = vpop.f32.mrf.mxu0
        %700 = vmatprep.mubr.bf16.mxu0 0
        %701 = vmatmul.mubr.bf16.gmra.mxu0 %v360
        %v702 = vpop.f32.mrf.mxu0
        %v703 = vadd.f32 0.0, %v702
        %v704 = vpop.f32.mrf.mxu0
        %v705 = vpop.f32.mrf.mxu0
        %v706 = vadd.f32 0.0, %v705
        %v707 = vpop.f32.mrf.mxu0
        %708 = vmatprep.mubr.bf16.mxu0 0
        %709 = vmatmul.mubr.bf16.gmra.mxu0 %v363
        %v710 = vpop.f32.mrf.mxu0
        %v711 = vadd.f32 0.0, %v710
        %v712 = vpop.f32.mrf.mxu0
        %v713 = vpop.f32.mrf.mxu0
        %v714 = vadd.f32 0.0, %v713
        %v715 = vpop.f32.mrf.mxu0
        %716 = vmatprep.mubr.bf16.mxu0 0
        %717 = vmatmul.mubr.bf16.gmra.mxu0 %v366
        %v718 = vpop.f32.mrf.mxu0
        %v719 = vadd.f32 0.0, %v718
        %v720 = vpop.f32.mrf.mxu0
        %v721 = vpop.f32.mrf.mxu0
        %v722 = vadd.f32 0.0, %v721
        %v723 = vpop.f32.mrf.mxu0
        %724 = vmatprep.mubr.bf16.mxu0 0
        %725 = vmatmul.mubr.bf16.gmra.mxu0 %v496
        %v726 = vpop.f32.mrf.mxu0
        %v727 = vadd.f32 0.0, %v726
        %v728 = vpop.f32.mrf.mxu0
        %v729 = vpop.f32.mrf.mxu0
        %v730 = vadd.f32 0.0, %v729
        %v731 = vpop.f32.mrf.mxu0
        %732 = vmatprep.mubr.bf16.mxu0 0
        %733 = vmatmul.mubr.bf16.gmra.mxu0 %v642
        %v734 = vpop.f32.mrf.mxu0
        %v735 = vadd.f32 0.0, %v734
        %v736 = vpop.f32.mrf.mxu0
        %v737 = vpop.f32.mrf.mxu0
        %v738 = vadd.f32 0.0, %v737
        %v739 = vpop.f32.mrf.mxu0
        %740 = vdwg.mxu0
        %v741 = vadd.f32 %v595, %v679
        %v742 = vadd.f32 %v596, %v682
        %v743 = vadd.f32 %v597, %v687
        %v744 = vadd.f32 %v598, %v690
        %v745 = vadd.f32 %v599, %v695
        %v746 = vadd.f32 %v600, %v698
        %v747 = vadd.f32 %v601, %v703
        %v748 = vadd.f32 %v602, %v706
        %v749 = vadd.f32 %v603, %v711
        %v750 = vadd.f32 %v604, %v714
        %v751 = vadd.f32 %v605, %v719
        %v752 = vadd.f32 %v606, %v722
        %v753 = vadd.f32 %v607, %v727
        %v754 = vadd.f32 %v608, %v730
        %v755 = vadd.f32 %v609, %v735
        %v756 = vadd.f32 %v610, %v738
        %v757 = vmax.f32 %v741, 0.0
        %v758 = vmax.f32 %v742, 0.0
        %v759 = vmax.f32 %v743, 0.0
        %v760 = vmax.f32 %v744, 0.0
        %v761 = vmax.f32 %v745, 0.0
        %v762 = vmax.f32 %v746, 0.0
        %v763 = vmax.f32 %v747, 0.0
        %v764 = vmax.f32 %v748, 0.0
        %v765 = vmax.f32 %v749, 0.0
        %v766 = vmax.f32 %v750, 0.0
        %v767 = vmax.f32 %v751, 0.0
        %v768 = vmax.f32 %v752, 0.0
        %v769 = vmax.f32 %v753, 0.0
        %v770 = vmax.f32 %v754, 0.0
        %v771 = vmax.f32 %v755, 0.0
        %v772 = vmax.f32 %v756, 0.0
        %v773 = vpack.c.bf16 %v758, %v757
        %v774 = vpack.c.bf16 %v760, %v759
        %v775 = vpack.c.bf16 %v762, %v761
        %v776 = vpack.c.bf16 %v764, %v763
        %v777 = vpack.c.bf16 %v766, %v765
        %v778 = vpack.c.bf16 %v768, %v767
        %v779 = vpack.c.bf16 %v770, %v769
        %v780 = vpack.c.bf16 %v772, %v771
        %v781 = vld [vmem:[%s3] sm:$0xf]
        %v782 = vld [vmem:[%s3 + $0x4] sm:$0xf]
        %v783 = vld [vmem:[%s3 + $0x8] sm:$0xf]
        %v784 = vld [vmem:[%s3 + $0xc] sm:$0xf]
        %v785 = vld [vmem:[%s4] sm:$0x1]
        %v787 = vlaneseq
        %v788 = vshrl.u32 %v787, 7
        %v789 = vsub.s32 0, %v788
        %v790 = vrot.slane %v785, %v789
        %v796 = vunpack.c.l.b16 %v781
        %v797 = vunpack.c.l.b16 %v782
        %v798 = vunpack.c.l.b16 %v783
        %v799 = vunpack.c.l.b16 %v784
        %v800 = vpack.c.b16 %v797, %v796
        %v801 = vpack.c.b16 %v799, %v798
        %vm804 = vcmask 261120
        %v806 = vsel %vm804, %v773, 0
        %v809 = vsel %vm804, %v774, 0
        %v812 = vsel %vm804, %v775, 0
        %v815 = vsel %vm804, %v776, 0
        %v818 = vsel %vm804, %v777, 0
        %v821 = vsel %vm804, %v778, 0
        %v824 = vsel %vm804, %v779, 0
        %v827 = vsel %vm804, %v780, 0
        %829 = vmatprep.subr.bf16.mxu0 0
        %830 = vmatpush1.bf16.msra.mxu0 0
        %831 = vmatprep.subr.bf16.mxu0 0
        %832 = vmatpush1.bf16.msra.mxu0 0
        %833 = vmatprep.subr.bf16.mxu0 0
        %834 = vmatpush1.bf16.msra.mxu0 0
        %835 = vmatprep.subr.bf16.mxu0 0
        %836 = vmatpush1.bf16.msra.mxu0 0
        %837 = vmatprep.subr.bf16.mxu0 0
        %838 = vmatpush1.bf16.msra.mxu0 0
        %839 = vmatprep.subr.bf16.mxu0 0
        %840 = vmatpush1.bf16.msra.mxu0 0
        %841 = vmatprep.subr.bf16.mxu0 0
        %842 = vmatpush1.bf16.msra.mxu0 %v801
        %843 = vmatprep.subr.bf16.mxu0 0
        %844 = vmatpush1.bf16.msra.mxu0 %v800
        %845 = vmatprep.subr.bf16.mxu0 0
        %846 = vmatpush2.bf16.msra.mxu0 0
        %847 = vmatprep.subr.bf16.mxu0 0
        %848 = vmatpush2.bf16.msra.mxu0 0
        %849 = vmatprep.subr.bf16.mxu0 0
        %850 = vmatpush2.bf16.msra.mxu0 0
        %851 = vmatprep.subr.bf16.mxu0 0
        %852 = vmatpush2.bf16.msra.mxu0 0
        %853 = vmatprep.subr.bf16.mxu0 0
        %854 = vmatpush2.bf16.msra.mxu0 0
        %855 = vmatprep.subr.bf16.mxu0 0
        %856 = vmatpush2.bf16.msra.mxu0 0
        %857 = vmatprep.subr.bf16.mxu0 0
        %858 = vmatpush2.bf16.msra.mxu0 0
        %859 = vmatprep.subr.bf16.mxu0 0
        %860 = vmatpush2.bf16.msra.mxu0 0
        %861 = vmatprep.mubr.bf16.mxu0 0
        %862 = vmatmul.mubr.bf16.gmra.mxu0 %v806
        %v863 = vpop.f32.mrf.mxu0
        %v864 = vadd.f32 %v790, %v863
        %v865 = vpop.f32.mrf.mxu0
        %v866 = vpop.f32.mrf.mxu0
        %v867 = vadd.f32 %v790, %v866
        %v868 = vpop.f32.mrf.mxu0
        %869 = vmatprep.mubr.bf16.mxu0 0
        %870 = vmatmul.mubr.bf16.gmra.mxu0 %v809
        %v871 = vpop.f32.mrf.mxu0
        %v872 = vadd.f32 %v790, %v871
        %v873 = vpop.f32.mrf.mxu0
        %v874 = vpop.f32.mrf.mxu0
        %v875 = vadd.f32 %v790, %v874
        %v876 = vpop.f32.mrf.mxu0
        %877 = vmatprep.mubr.bf16.mxu0 0
        %878 = vmatmul.mubr.bf16.gmra.mxu0 %v812
        %v879 = vpop.f32.mrf.mxu0
        %v880 = vadd.f32 %v790, %v879
        %v881 = vpop.f32.mrf.mxu0
        %v882 = vpop.f32.mrf.mxu0
        %v883 = vadd.f32 %v790, %v882
        %v884 = vpop.f32.mrf.mxu0
        %885 = vmatprep.mubr.bf16.mxu0 0
        %886 = vmatmul.mubr.bf16.gmra.mxu0 %v815
        %v887 = vpop.f32.mrf.mxu0
        %v888 = vadd.f32 %v790, %v887
        %v889 = vpop.f32.mrf.mxu0
        %v890 = vpop.f32.mrf.mxu0
        %v891 = vadd.f32 %v790, %v890
        %v892 = vpop.f32.mrf.mxu0
        %893 = vmatprep.mubr.bf16.mxu0 0
        %894 = vmatmul.mubr.bf16.gmra.mxu0 %v818
        %v895 = vpop.f32.mrf.mxu0
        %v896 = vadd.f32 %v790, %v895
        %v897 = vpop.f32.mrf.mxu0
        %v898 = vpop.f32.mrf.mxu0
        %v899 = vadd.f32 %v790, %v898
        %v900 = vpop.f32.mrf.mxu0
        %901 = vmatprep.mubr.bf16.mxu0 0
        %902 = vmatmul.mubr.bf16.gmra.mxu0 %v821
        %v903 = vpop.f32.mrf.mxu0
        %v904 = vadd.f32 %v790, %v903
        %v905 = vpop.f32.mrf.mxu0
        %v906 = vpop.f32.mrf.mxu0
        %v907 = vadd.f32 %v790, %v906
        %v908 = vpop.f32.mrf.mxu0
        %909 = vmatprep.mubr.bf16.mxu0 0
        %910 = vmatmul.mubr.bf16.gmra.mxu0 %v824
        %v911 = vpop.f32.mrf.mxu0
        %v912 = vadd.f32 %v790, %v911
        %v913 = vpop.f32.mrf.mxu0
        %v914 = vpop.f32.mrf.mxu0
        %v915 = vadd.f32 %v790, %v914
        %v916 = vpop.f32.mrf.mxu0
        %917 = vmatprep.mubr.bf16.mxu0 0
        %918 = vmatmul.mubr.bf16.gmra.mxu0 %v827
        %v919 = vpop.f32.mrf.mxu0
        %v920 = vadd.f32 %v790, %v919
        %v921 = vpop.f32.mrf.mxu0
        %v922 = vpop.f32.mrf.mxu0
        %v923 = vadd.f32 %v790, %v922
        %v924 = vpop.f32.mrf.mxu0
        %925 = vdwg.mxu0
        %926 = vst [vmem:[%s241] sm:$0xff] %v864
        %927 = vst [vmem:[%s241 + $0x8] sm:$0xff] %v867
        %928 = vst [vmem:[%s241 + $0x10] sm:$0xff] %v872
        %929 = vst [vmem:[%s241 + $0x18] sm:$0xff] %v875
        %930 = vst [vmem:[%s241 + $0x20] sm:$0xff] %v880
        %931 = vst [vmem:[%s241 + $0x28] sm:$0xff] %v883
        %932 = vst [vmem:[%s241 + $0x30] sm:$0xff] %v888
        %933 = vst [vmem:[%s241 + $0x38] sm:$0xff] %v891
        %934 = vst [vmem:[%s241 + $0x40] sm:$0xff] %v896
        %935 = vst [vmem:[%s241 + $0x48] sm:$0xff] %v899
        %936 = vst [vmem:[%s241 + $0x50] sm:$0xff] %v904
        %937 = vst [vmem:[%s241 + $0x58] sm:$0xff] %v907
        %938 = vst [vmem:[%s241 + $0x60] sm:$0xff] %v912
        %939 = vst [vmem:[%s241 + $0x68] sm:$0xff] %v915
        %940 = vst [vmem:[%s241 + $0x70] sm:$0xff] %v920
        %941 = vst [vmem:[%s241 + $0x78] sm:$0xff] %v923
        %s942 = sand.u32 %s153, 1
        %s943 = scalar_lea.sflag [#allocation3], %s942
        %s944 = sand.u32 %s153, 1
        %s945 = smul.addr %s944, 128
        %s946 = scalar_lea.vmem [#allocation2], %s945
        // Predicated region
        $region41: #{rpn_head_pallas.1} parent=39 // pred_check
          %p947 = pneg %p163
        $region42: #{rpn_head_pallas.1} parent=39 // pred_check_branch
          %949 = sbr.rel (%p947) target = $region44
        $region43: #{rpn_head_pallas.1} parent=39 // pred_region
          %s951 = ssub.s32 2048, 2048
          %952 = vsyncadd %s943, %s951
          %s953 = smul.addr %s24, 16
          %s954 = smul.addr %s23, 32
          %s955 = sadd.s32 %s953, %s954
          %s956 = smul.addr %s955, 128
          %s957 = scalar_lea.hbm %s5, %s956
          %s958 = sshll.u32 %s946, 4
          %s959 = int_to_ptr.vmem [resolvable:$true] %s958
          %964 = dma.vmem_to_hbm [thread:$0]  %s959, 2048, %s957, %s943, 128, 128, 8
        $region44: #{rpn_head_pallas.1} parent=39 // pred_fallthru
          _
      $region40: #{rpn_head_pallas.1} parent=5 // pred_fallthru
        _
      %p965 = scmp.le.s32.totalorder 2, %s14
      // Predicated region
      $region45: #{rpn_head_pallas.1} parent=5 // pred_check
        %p966 = pneg %p965
      $region46: #{rpn_head_pallas.1} parent=5 // pred_check_branch
        %968 = sbr.rel (%p966) target = $region48
      $region47: #{rpn_head_pallas.1} parent=5 // pred_region
        %s969 = ssub.s32 %s14, 2
        // Predicated region
        $region49: #{rpn_head_pallas.1} parent=47 // pred_check
          %p970 = pneg %p169
        $region50: #{rpn_head_pallas.1} parent=47 // pred_check_branch
          %972 = sbr.rel (%p970) target = $region52
        $region51: #{rpn_head_pallas.1} parent=47 // pred_region
          %s973 = sand.u32 %s154, 1
          %s974 = scalar_lea.sflag [#allocation3], %s973
          %s975 = sand.u32 %s154, 1
          %s976 = smul.addr %s975, 128
          %s977 = scalar_lea.vmem [#allocation2], %s976
          %978 = dma.done %s974, 2048
        $region52: #{rpn_head_pallas.1} parent=47 // pred_fallthru
          _
      $region48: #{rpn_head_pallas.1} parent=5 // pred_fallthru
        _
    $region6: #{rpn_head_pallas.1} parent=1 // loop_footer
      %s18 = sadd.s32 1, %s14
    $region7: #{rpn_head_pallas.1} parent=1 // loop_footer_branch
      %13 = sbr.rel target = $region3
    $region8: #{rpn_head_pallas.1} parent=1 // loop_exit
      _
    %979 = vsyncpa [#allocation3], 1
    %s980 = scalar_lea.sflag [#allocation3], 1
    %981 = vsyncpa %s980, 1

</llo_original>
